<compile_context>
chip_gen: v5e
topology: v5e:2x2
jax: 0.10.0
libtpu: 0.0.40
codegen_flags: <defaults>
</compile_context>

<pallas_src>
import functools

import jax
import jax.numpy as jnp
from jax.experimental import pallas as pl
from jax.experimental.pallas import tpu as pltpu

LANE = 128
SUB = 8          # sublanes per vreg
TR_MAX = 2048    # rows per tile -> (2048, 128) f32 = 1 MiB per input block


def _dice_kernel(x_ref, t_ref, out_ref, acc_ref, *, inner, tr, rows, needs_mask):
    o = pl.program_id(0)
    i = pl.program_id(1)

    @pl.when(i == 0)
    def _init():
        acc_ref[...] = jnp.zeros_like(acc_ref)

    x = x_ref[...].astype(jnp.float32)
    t = t_ref[...].astype(jnp.float32)
    p = jax.nn.sigmoid(x)          # EUP: free-ish (separate bundle slot)

    s = p + t                      # denominator contribution
    pt = p * t                     # intersection contribution

    if needs_mask:
        # Rows past the (padded) input are OOB / duplicated reads; zero their
        # contribution.  jnp.where (not multiply) so even NaN garbage from OOB
        # block padding cannot leak into the sums.
        blk = o * inner + i
        row = jax.lax.broadcasted_iota(jnp.int32, (tr, LANE), 0)
        valid = (blk * tr + row) < rows
        s = jnp.where(valid, s, 0.0)
        pt = jnp.where(valid, pt, 0.0)

    def _partial(v):
        # (tr,128) -> (tr//8, 8, 128) is vreg-aligned; the reduce is pure VALU
        # adds onto one vreg -- no cross-lane XLU work per step.
        return jnp.sum(v.reshape(tr // SUB, SUB, LANE), axis=0)

    acc_ref[0] += _partial(s)
    acc_ref[1] += _partial(pt)

    @pl.when(i == pl.num_programs(1) - 1)
    def _finish():
        # One cross-lane reduce per core per call -- off the per-step path.
        out_ref[0, 0] = jnp.sum(acc_ref[0])
        out_ref[0, 1] = jnp.sum(acc_ref[1])


def dice_loss(inputs, targets, smooth=1.0):
    """Pallas TPU implementation of DiceLoss.forward (returns a scalar)."""
    x = jnp.asarray(inputs)
    t = jnp.asarray(targets)
    # Keep floating inputs (e.g. bf16) in their native dtype to halve HBM
    # traffic; only ints/bools get widened here.
    if not jnp.issubdtype(x.dtype, jnp.floating):
        x = x.astype(jnp.float32)
    if not jnp.issubdtype(t.dtype, jnp.floating):
        t = t.astype(jnp.float32)

    n = x.size
    x = x.reshape(-1)
    t = t.reshape(-1)

    blk = SUB * LANE  # 1024 elements
    rem = n % blk
    if rem:
        pad = blk - rem
        x = jnp.pad(x, (0, pad), constant_values=-1e4)  # sigmoid -> 0 exactly
        t = jnp.pad(t, (0, pad), constant_values=0.0)

    rows = x.size // LANE  # multiple of 8
    x2 = x.reshape(rows, LANE)
    t2 = t.reshape(rows, LANE)

    tr = min(TR_MAX, rows)
    n_blocks = -(-rows // tr)
    nsplit = 2 if n_blocks >= 2 else 1   # split across 2 TensorCores on v7x
    inner = -(-n_blocks // nsplit)
    needs_mask = (nsplit * inner * tr) != rows

    def idx(o, i):
        b = jnp.minimum(o * inner + i, n_blocks - 1)  # clamp fully-OOB blocks
        return (b, 0)

    kernel = functools.partial(
        _dice_kernel, inner=inner, tr=tr, rows=rows, needs_mask=needs_mask
    )

    partials = pl.pallas_call(
        kernel,
        out_shape=jax.ShapeDtypeStruct((nsplit, 2), jnp.float32),
        grid_spec=pltpu.PrefetchScalarGridSpec(
            num_scalar_prefetch=0,
            grid=(nsplit, inner),
            in_specs=[
                pl.BlockSpec((tr, LANE), idx),
                pl.BlockSpec((tr, LANE), idx),
            ],
            out_specs=pl.BlockSpec((1, 2), lambda o, i: (o, 0),
                                   memory_space=pltpu.SMEM),
            scratch_shapes=[pltpu.VMEM((2, SUB, LANE), jnp.float32)],
        ),
        compiler_params=pltpu.CompilerParams(
            dimension_semantics=("parallel", "arbitrary"),
        ),
    )(x2, t2)

    sums = jnp.sum(partials, axis=0)      # combine per-core partials
    denom, inter = sums[0], sums[1]       # denom = sum(p) + sum(t)
    return 1.0 - (2.0 * inter + smooth) / (denom + smooth)


def _reference(inputs, targets, smooth=1.0):
    p = jax.nn.sigmoid(jnp.asarray(inputs, jnp.float32)).reshape(-1)
    t = jnp.asarray(targets, jnp.float32).reshape(-1)
    inter = jnp.sum(p * t)
    return 1.0 - (2.0 * inter + smooth) / (jnp.sum(p) + jnp.sum(t) + smooth)


if __name__ == "__main__":
    key = jax.random.PRNGKey(0)

    # Shapes implied by a segmentation loss: NCHW logits and binary masks.
    shapes = [
        (2, 4, 16, 16),     # primary small case: single tile, no masking
        (2, 3, 256, 256),   # multi-block: exercises 2-way core split + tail mask
        (1, 1, 10, 13),     # ragged size: exercises the tiny tail pad
    ]
    for shape in shapes:
        k1, k2, key = jax.random.split(key, 3)
        logits = jax.random.normal(k1, shape, dtype=jnp.float32)
        targets = jax.random.bernoulli(k2, p=0.3, shape=shape).astype(jnp.float32)

        out = dice_loss(logits, targets, smooth=1.0)
        jax.block_until_ready(out)

        ref = _reference(logits, targets, smooth=1.0)
        assert jnp.allclose(out, ref, atol=1e-4), (shape, out, ref)

    print("KERNEL_OK")
</pallas_src>

<mosaic_0001>
module attributes {stable_mosaic.version = 11 : i64} {
  func.func @_dice_kernel(%arg0: i32, %arg1: i32, %arg2: memref<16x128xf32, #tpu.memory_space<vmem>>, %arg3: memref<16x128xf32, #tpu.memory_space<vmem>>, %arg4: memref<1x2xf32, #tpu.memory_space<smem>>, %arg5: memref<2x8x128xf32, #tpu.memory_space<vmem>>) attributes {dimension_semantics = [#tpu.dimension_semantics<parallel>, #tpu.dimension_semantics<arbitrary>], iteration_bounds = array<i64: 1, 1>, scalar_prefetch = 0 : i64, scratch_operands = 1 : i64, tpu.core_type = #tpu.core_type<tc>, window_params = [{transform_indices = @transform_0, window_bounds = array<i64: 16, 128>}, {transform_indices = @transform_1, window_bounds = array<i64: 16, 128>}, {transform_indices = @transform_2, window_bounds = array<i64: 1, 2>}]} {
    %c0_i32 = arith.constant 0 : i32
    %0 = arith.cmpi eq, %arg1, %c0_i32 : i32
    %1 = arith.extui %0 : i1 to i32
    %c0_i32_0 = arith.constant 0 : i32
    %2 = arith.cmpi ne, %1, %c0_i32_0 : i32
    scf.if %2 {
      %cst_19 = arith.constant 0.000000e+00 : f32
      %31 = vector.broadcast %cst_19 : f32 to vector<2x8x128xf32>
      %c0_20 = arith.constant 0 : index
      %c0_21 = arith.constant 0 : index
      %c0_22 = arith.constant 0 : index
      %32 = vector.load %arg5[%c0_20, %c0_21, %c0_22] : memref<2x8x128xf32, #tpu.memory_space<vmem>>, vector<2x8x128xf32>
      tpu.vector_store %arg5[%c0_20, %c0_21, %c0_22], %31 {strides = array<i32>} : memref<2x8x128xf32, #tpu.memory_space<vmem>>, vector<2x8x128xf32>,
    } else {
    }
    %c0 = arith.constant 0 : index
    %c0_1 = arith.constant 0 : index
    %3 = vector.load %arg2[%c0, %c0_1] : memref<16x128xf32, #tpu.memory_space<vmem>>, vector<16x128xf32>
    %c0_2 = arith.constant 0 : index
    %c0_3 = arith.constant 0 : index
    %4 = vector.load %arg3[%c0_2, %c0_3] : memref<16x128xf32, #tpu.memory_space<vmem>>, vector<16x128xf32>
    %5 = arith.negf %3 : vector<16x128xf32>
    %6 = math.exp %5 : vector<16x128xf32>
    %cst = arith.constant 1.000000e+00 : f32
    %7 = vector.broadcast %cst : f32 to vector<16x128xf32>
    %8 = arith.addf %7, %6 : vector<16x128xf32>
    %9 = arith.divf %7, %8 : vector<16x128xf32>
    %10 = arith.addf %9, %4 : vector<16x128xf32>
    %11 = arith.mulf %9, %4 : vector<16x128xf32>
    %c0_4 = arith.constant 0 : index
    %c0_5 = arith.constant 0 : index
    %c0_6 = arith.constant 0 : index
    %12 = vector.load %arg5[%c0_4, %c0_5, %c0_6] : memref<2x8x128xf32, #tpu.memory_space<vmem>>, vector<1x8x128xf32>
    %13 = vector.shape_cast %12 : vector<1x8x128xf32> to vector<8x128xf32>
    %14 = vector.shape_cast %10 : vector<16x128xf32> to vector<2x8x128xf32>
    %cst_7 = arith.constant dense<0.000000e+00> : vector<8x128xf32>
    %15 = vector.multi_reduction <add>, %14, %cst_7 [0] : vector<2x8x128xf32> to vector<8x128xf32>
    %16 = arith.addf %13, %15 : vector<8x128xf32>
    %c0_8 = arith.constant 0 : index
    %c0_9 = arith.constant 0 : index
    %c0_10 = arith.constant 0 : index
    %17 = vector.load %arg5[%c0_8, %c0_9, %c0_10] : memref<2x8x128xf32, #tpu.memory_space<vmem>>, vector<1x8x128xf32>
    %18 = vector.shape_cast %17 : vector<1x8x128xf32> to vector<8x128xf32>
    %19 = vector.shape_cast %16 : vector<8x128xf32> to vector<1x8x128xf32>
    tpu.vector_store %arg5[%c0_8, %c0_9, %c0_10], %19 {strides = array<i32>} : memref<2x8x128xf32, #tpu.memory_space<vmem>>, vector<1x8x128xf32>,
    %c1 = arith.constant 1 : index
    %c0_11 = arith.constant 0 : index
    %c0_12 = arith.constant 0 : index
    %20 = vector.load %arg5[%c1, %c0_11, %c0_12] : memref<2x8x128xf32, #tpu.memory_space<vmem>>, vector<1x8x128xf32>
    %21 = vector.shape_cast %20 : vector<1x8x128xf32> to vector<8x128xf32>
    %22 = vector.shape_cast %11 : vector<16x128xf32> to vector<2x8x128xf32>
    %cst_13 = arith.constant dense<0.000000e+00> : vector<8x128xf32>
    %23 = vector.multi_reduction <add>, %22, %cst_13 [0] : vector<2x8x128xf32> to vector<8x128xf32>
    %24 = arith.addf %21, %23 : vector<8x128xf32>
    %c1_14 = arith.constant 1 : index
    %c0_15 = arith.constant 0 : index
    %c0_16 = arith.constant 0 : index
    %25 = vector.load %arg5[%c1_14, %c0_15, %c0_16] : memref<2x8x128xf32, #tpu.memory_space<vmem>>, vector<1x8x128xf32>
    %26 = vector.shape_cast %25 : vector<1x8x128xf32> to vector<8x128xf32>
    %27 = vector.shape_cast %24 : vector<8x128xf32> to vector<1x8x128xf32>
    tpu.vector_store %arg5[%c1_14, %c0_15, %c0_16], %27 {strides = array<i32>} : memref<2x8x128xf32, #tpu.memory_space<vmem>>, vector<1x8x128xf32>,
    %c0_i32_17 = arith.constant 0 : i32
    %28 = arith.cmpi eq, %arg1, %c0_i32_17 : i32
    %29 = arith.extui %28 : i1 to i32
    %c0_i32_18 = arith.constant 0 : i32
    %30 = arith.cmpi ne, %29, %c0_i32_18 : i32
    scf.if %30 {
      %c0_19 = arith.constant 0 : index
      %c0_20 = arith.constant 0 : index
      %c0_21 = arith.constant 0 : index
      %31 = vector.load %arg5[%c0_19, %c0_20, %c0_21] : memref<2x8x128xf32, #tpu.memory_space<vmem>>, vector<1x8x128xf32>
      %32 = vector.shape_cast %31 : vector<1x8x128xf32> to vector<8x128xf32>
      %33 = vector.shape_cast %32 : vector<8x128xf32> to vector<1x8x128xf32>
      %cst_22 = arith.constant dense<0.000000e+00> : vector<1xf32>
      %34 = vector.multi_reduction <add>, %33, %cst_22 [1, 2] : vector<1x8x128xf32> to vector<1xf32>
      %35 = vector.shape_cast %34 : vector<1xf32> to vector<1x1x1xf32>
      %36 = vector.extract %35[0, 0, 0] : f32 from vector<1x1x1xf32>
      %c0_23 = arith.constant 0 : index
      %c0_24 = arith.constant 0 : index
      %37 = memref.load %arg4[%c0_23, %c0_24] : memref<1x2xf32, #tpu.memory_space<smem>>
      memref.store %36, %arg4[%c0_23, %c0_24] : memref<1x2xf32, #tpu.memory_space<smem>>
      %c1_25 = arith.constant 1 : index
      %c0_26 = arith.constant 0 : index
      %c0_27 = arith.constant 0 : index
      %38 = vector.load %arg5[%c1_25, %c0_26, %c0_27] : memref<2x8x128xf32, #tpu.memory_space<vmem>>, vector<1x8x128xf32>
      %39 = vector.shape_cast %38 : vector<1x8x128xf32> to vector<8x128xf32>
      %40 = vector.shape_cast %39 : vector<8x128xf32> to vector<1x8x128xf32>
      %cst_28 = arith.constant dense<0.000000e+00> : vector<1xf32>
      %41 = vector.multi_reduction <add>, %40, %cst_28 [1, 2] : vector<1x8x128xf32> to vector<1xf32>
      %42 = vector.shape_cast %41 : vector<1xf32> to vector<1x1x1xf32>
      %43 = vector.extract %42[0, 0, 0] : f32 from vector<1x1x1xf32>
      %c0_29 = arith.constant 0 : index
      %c1_30 = arith.constant 1 : index
      %44 = memref.load %arg4[%c0_29, %c1_30] : memref<1x2xf32, #tpu.memory_space<smem>>
      memref.store %43, %arg4[%c0_29, %c1_30] : memref<1x2xf32, #tpu.memory_space<smem>>
    } else {
    }
    return
  }
  func.func @transform_0(%arg0: i32, %arg1: i32) -> (i32, i32) {
    %c1_i32 = arith.constant 1 : i32
    %0 = arith.muli %arg0, %c1_i32 : i32
    %1 = arith.addi %0, %arg1 : i32
    %c0_i32 = arith.constant 0 : i32
    %2 = arith.minsi %1, %c0_i32 : i32
    %c0_i32_0 = arith.constant 0 : i32
    %c0_i32_1 = arith.constant 0 : i32
    return %2, %c0_i32_0 : i32, i32
  }
  func.func @transform_1(%arg0: i32, %arg1: i32) -> (i32, i32) {
    %c1_i32 = arith.constant 1 : i32
    %0 = arith.muli %arg0, %c1_i32 : i32
    %1 = arith.addi %0, %arg1 : i32
    %c0_i32 = arith.constant 0 : i32
    %2 = arith.minsi %1, %c0_i32 : i32
    %c0_i32_0 = arith.constant 0 : i32
    %c0_i32_1 = arith.constant 0 : i32
    return %2, %c0_i32_0 : i32, i32
  }
  func.func @transform_2(%arg0: i32, %arg1: i32) -> (i32, i32) {
    %c0_i32 = arith.constant 0 : i32
    %c0_i32_0 = arith.constant 0 : i32
    return %arg0, %c0_i32 : i32, i32
  }
}

</mosaic_0001>

<llo_original>
// kernel: tpu_custom_call.1
$region0: #{tpu_custom_call.1}
  #allocation0 [shape = 'u32[]', space=smem, size = 0x4, offset = 0x4, fixed_abs, tag = 'smem constant byte address 0x4 - core index']
  #allocation1 [shape = 'u32[72,128]{1,0:T(1,128)}', space=vmem, size = 0x9000, scoped, tag = 'internal scratch']
  #allocation2 [shape = 'f32[2,8,128]{2,1,0:T(8,128)}', space=vmem, size = 0x2000, scoped, tag = 'scratch operand']
  %s0 = inlined_call_operand.hbm [shape: f32[16,128], index: 0, kind: input, shape index: {}]
  %s1 = inlined_call_operand.hbm [shape: f32[16,128], index: 1, kind: input, shape index: {}]
  %s2 = inlined_call_operand.hbm [shape: f32[1,2], index: 2, kind: output, shape index: {}]
  %s3 = sld [smem:[#allocation0]]
  $region34: #{tpu_custom_call.1} parent=0
    _
  %s5 = ssub.s32 1, %s3
  %s6 = scalar_select 0, %s5, %s3
  $region1: #{tpu_custom_call.1} parent=0
    #allocation3 [shape = 'u8[8192]{0}', space=vmem, size = 0x2000, scoped, tag = 'input window, operand 0, single buffered']
    #allocation4 [shape = 's32[1]{0}', space=sflag, size = 0x4, scoped, tag = 'scoped memory for tpu_custom_call.1']
    #allocation5 [shape = 's32[1]{0}', space=sflag, size = 0x4, scoped, tag = 'scoped memory for tpu_custom_call.1']
    #allocation6 [shape = 'u8[8192]{0}', space=vmem, size = 0x2000, scoped, tag = 'input window, operand 1, single buffered']
    #allocation7 [shape = 's32[1]{0}', space=sflag, size = 0x4, scoped, tag = 'scoped memory for tpu_custom_call.1']
    #allocation8 [shape = 'u8[512]{0}', space=smem, size = 0x200, scoped, tag = 'output window, operand 0, single buffered']
    %7 = vsyncpa [#allocation4], 0
    %8 = vsyncpa [#allocation7], 0
    %9 = vsyncpa [#allocation5], 0
    // Predicated region
    $region2: #{tpu_custom_call.1} parent=1 // pred_check
      _
    $region3: #{tpu_custom_call.1} parent=1 // pred_check_branch
      %11 = sbr.rel (0) target = $region5
    $region4: #{tpu_custom_call.1} parent=1 // pred_region
      %s12 = sadd.s32 0, 0
      %p13 = scmp.lt.s32.totalorder %s12, 0
      %s14 = scalar_select %p13, %s12, 0
      %s15 = smul.u32 2, %s14
      %17 = vsyncadd [#allocation4], 0
      %s18 = smul.addr %s15, 8
      %s19 = scalar_lea.hbm %s0, %s18
      %s20 = sshll.u32 %s19, 4
      %s21 = int_to_ptr.hbm [resolvable:$true] %s20
      %s22 = sshll.u32 [#allocation3], 4
      %s23 = int_to_ptr.vmem [resolvable:$true] %s22
      %28 = dma.hbm_to_vmem [thread:$0]  %s21, 256, %s23, [#allocation4], 128, 128, 8
    $region5: #{tpu_custom_call.1} parent=1 // pred_fallthru
      _
    // Predicated region
    $region6: #{tpu_custom_call.1} parent=1 // pred_check
      _
    $region7: #{tpu_custom_call.1} parent=1 // pred_check_branch
      %30 = sbr.rel (0) target = $region9
    $region8: #{tpu_custom_call.1} parent=1 // pred_region
      %s31 = sadd.s32 0, 0
      %p32 = scmp.lt.s32.totalorder %s31, 0
      %s33 = scalar_select %p32, %s31, 0
      %s34 = smul.u32 2, %s33
      %36 = vsyncadd [#allocation7], 0
      %s37 = smul.addr %s34, 8
      %s38 = scalar_lea.hbm %s1, %s37
      %s39 = sshll.u32 %s38, 4
      %s40 = int_to_ptr.hbm [resolvable:$true] %s39
      %s41 = sshll.u32 [#allocation6], 4
      %s42 = int_to_ptr.vmem [resolvable:$true] %s41
      %47 = dma.hbm_to_vmem [thread:$0]  %s40, 256, %s42, [#allocation7], 128, 128, 8
    $region9: #{tpu_custom_call.1} parent=1 // pred_fallthru
      _
    // Predicated region
    $region10: #{tpu_custom_call.1} parent=1 // pred_check
      _
    $region11: #{tpu_custom_call.1} parent=1 // pred_check_branch
      %49 = sbr.rel (0) target = $region13
    $region12: #{tpu_custom_call.1} parent=1 // pred_region
      %51 = dma.done [#allocation4], 256
    $region13: #{tpu_custom_call.1} parent=1 // pred_fallthru
      _
    // Predicated region
    $region14: #{tpu_custom_call.1} parent=1 // pred_check
      _
    $region15: #{tpu_custom_call.1} parent=1 // pred_check_branch
      %53 = sbr.rel (0) target = $region17
    $region16: #{tpu_custom_call.1} parent=1 // pred_region
      %55 = dma.done [#allocation7], 256
    $region17: #{tpu_custom_call.1} parent=1 // pred_fallthru
      _
    %s56 = sadd.s32 0, 0
    %p57 = scmp.lt.s32.totalorder %s56, 0
    %s58 = scalar_select %p57, %s56, 0
    %s59 = smul.u32 2, %s58
    %s60 = sadd.s32 0, 0
    %p61 = scmp.lt.s32.totalorder %s60, 0
    %s62 = scalar_select %p61, %s60, 0
    %s63 = smul.u32 2, %s62
    %p64 = scmp.eq.s32.totalorder 0, 0
    // Predicated region
    $region18: #{tpu_custom_call.1} parent=1 // pred_check
      %p65 = pneg %p64
    $region19: #{tpu_custom_call.1} parent=1 // pred_check_branch
      %67 = sbr.rel (%p65) target = $region21
    $region20: #{tpu_custom_call.1} parent=1 // pred_region
      %68 = vst [vmem:[#allocation2] sm:$0xff] 0.0
      %69 = vst [vmem:[#allocation2 + $0x8] sm:$0xff] 0.0
    $region21: #{tpu_custom_call.1} parent=1 // pred_fallthru
      _
    %v70 = vld [vmem:[#allocation3] sm:$0xff]
    %v71 = vld [vmem:[#allocation3 + $0x8] sm:$0xff]
    %v72 = vld [vmem:[#allocation6] sm:$0xff]
    %v73 = vld [vmem:[#allocation6 + $0x8] sm:$0xff]
    %v74 = vxor.u32 %v70, 2147483648
    %v75 = vxor.u32 %v71, 2147483648
    %v76 = vmul.f32 %v74, 1.442695
    %v77 = vpow.pop %v76
    %v78 = vmul.f32 %v75, 1.442695
    %v79 = vpow.pop %v78
    %v80 = vadd.f32 %v77, 1.0
    %v81 = vadd.f32 %v79, 1.0
    %v82 = vrcp.pop %v80
    %v83 = vmul.f32 %v80, %v82
    %v84 = vsub.f32 1.0, %v83
    %v85 = vmul.f32 %v82, %v84
    %v86 = vadd.f32 %v82, %v85
    %vm87 = vweird.f32 %v80
    %vm88 = vweird.f32 %v82
    %vm89 = vmor %vm87, %vm88
    %v90 = vsel %vm89, %v82, %v86
    %v91 = vand.u32 2147483647, %v80
    %vm92 = vcmp.eq.f32.partialorder %v91, 8.507059e+37
    %v93 = vand.u32 %v80, 2147483648
    %v94 = vor.u32 1.1754944e-38, %v93
    %v95 = vsel %vm92, %v94, %v90
    %v96 = vmul.f32 1.0, %v95
    %v97 = vrcp.pop %v81
    %v98 = vmul.f32 %v81, %v97
    %v99 = vsub.f32 1.0, %v98
    %v100 = vmul.f32 %v97, %v99
    %v101 = vadd.f32 %v97, %v100
    %vm102 = vweird.f32 %v81
    %vm103 = vweird.f32 %v97
    %vm104 = vmor %vm102, %vm103
    %v105 = vsel %vm104, %v97, %v101
    %v106 = vand.u32 2147483647, %v81
    %vm107 = vcmp.eq.f32.partialorder %v106, 8.507059e+37
    %v108 = vand.u32 %v81, 2147483648
    %v109 = vor.u32 1.1754944e-38, %v108
    %v110 = vsel %vm107, %v109, %v105
    %v111 = vmul.f32 1.0, %v110
    %v112 = vadd.f32 %v96, %v72
    %v113 = vadd.f32 %v111, %v73
    %v114 = vmul.f32 %v96, %v72
    %v115 = vmul.f32 %v111, %v73
    %v116 = vld [vmem:[#allocation2] sm:$0xff]
    %v117 = vadd.f32 %v112, %v113
    %v118 = vadd.f32 %v116, %v117
    %119 = vst [vmem:[#allocation2] sm:$0xff] %v118
    %s120 = scalar_lea.vmem [#allocation2], 8
    %v121 = vld [vmem:[%s120] sm:$0xff]
    %v122 = vadd.f32 %v114, %v115
    %v123 = vadd.f32 %v121, %v122
    %124 = vst [vmem:[%s120] sm:$0xff] %v123
    // Predicated region
    $region22: #{tpu_custom_call.1} parent=1 // pred_check
      %p125 = pneg %p64
    $region23: #{tpu_custom_call.1} parent=1 // pred_check_branch
      %127 = sbr.rel (%p125) target = $region25
    $region24: #{tpu_custom_call.1} parent=1 // pred_region
      %v128 = vld [vmem:[#allocation2] sm:$0xff]
      %129 = vadd.xlane.f32.xlu0 %v128
      %v130 = vpop.xlane.xlu0 %129
      %v131 = vrot.slane %v130, 4
      %v132 = vadd.f32 %v130, %v131
      %v133 = vrot.slane %v132, 2
      %v134 = vadd.f32 %v132, %v133
      %v135 = vrot.slane %v134, 1
      %v136 = vadd.f32 %v134, %v135
      %s137 = vtos %v136
      %s138 = scalar_lea.smem [#allocation8], 0
      %139 = sst [smem:[%s138]] %s137
      %v140 = vld [vmem:[%s120] sm:$0xff]
      %141 = vadd.xlane.f32.xlu0 %v140
      %v142 = vpop.xlane.xlu0 %141
      %v143 = vrot.slane %v142, 4
      %v144 = vadd.f32 %v142, %v143
      %v145 = vrot.slane %v144, 2
      %v146 = vadd.f32 %v144, %v145
      %v147 = vrot.slane %v146, 1
      %v148 = vadd.f32 %v146, %v147
      %s149 = vtos %v148
      %s150 = scalar_lea.smem [#allocation8], 1
      %151 = sst [smem:[%s150]] %s149
    $region25: #{tpu_custom_call.1} parent=1 // pred_fallthru
      _
    // Predicated region
    $region26: #{tpu_custom_call.1} parent=1 // pred_check
      _
    $region27: #{tpu_custom_call.1} parent=1 // pred_check_branch
      %153 = sbr.rel (0) target = $region29
    $region28: #{tpu_custom_call.1} parent=1 // pred_region
      %155 = vsyncadd [#allocation5], 0
      %s157 = sshll.u32 %s2, 4
      %s158 = int_to_ptr.hbm [resolvable:$true] %s157
      %160 = dma.smem_to_hbm [#allocation8], 16, %s158, [#allocation5]
    $region29: #{tpu_custom_call.1} parent=1 // pred_fallthru
      _
    // Predicated region
    $region30: #{tpu_custom_call.1} parent=1 // pred_check
      _
    $region31: #{tpu_custom_call.1} parent=1 // pred_check_branch
      %162 = sbr.rel (0) target = $region33
    $region32: #{tpu_custom_call.1} parent=1 // pred_region
      %164 = dma.done [#allocation5], 16
    $region33: #{tpu_custom_call.1} parent=1 // pred_fallthru
      _
    %165 = sfence
    %166 = vsyncpa [#allocation4], 1
    %167 = vsyncpa [#allocation7], 1
    %168 = vsyncpa [#allocation5], 1

</llo_original>
